<compile_context>
chip_gen: v5e
topology: v5e:2x2
jax: 0.10.0
libtpu: 0.0.40
codegen_flags: <defaults>
</compile_context>

<pallas_src>
import functools

import jax
import jax.numpy as jnp
from jax.experimental import pallas as pl
from jax.experimental.pallas import tpu as pltpu

_LANE = 128  # padded hidden width for every layer (all hidden/out dims must be <= 128)


def _round_up(x, m):
    return (x + m - 1) // m * m


def _mlp_logits_kernel(x_ref, w1_ref, w2_ref, w3_ref, w4_ref,
                       b1_ref, b2_ref, b3_ref, b4_ref, o_ref):
    """One batch tile, transposed layout (batch on lanes).

    x_ref : (p1, tb)       bf16  obs^T, feature rows padded to p1 (multiple of 16)
    wN_ref: (128, K)       bf16  zero-padded W_N^T (K = p1 for layer 1, else 128)
    bN_ref: (128, 1)       f32   zero-padded bias column (broadcast over lanes)
    o_ref : (out_rows, tb) f32   first out_rows sublanes of the final logits
    """
    f32 = jnp.float32
    x = x_ref[...]                                               # (p1, tb) bf16

    # layer1 + relu   (bf16 matmul, f32 accumulate / elementwise)
    h = jnp.dot(w1_ref[...], x, preferred_element_type=f32) + b1_ref[...]
    h = jnp.maximum(h, 0.0).astype(jnp.bfloat16)                 # (128, tb)
    # layer2 + relu
    h = jnp.dot(w2_ref[...], h, preferred_element_type=f32) + b2_ref[...]
    h = jnp.maximum(h, 0.0).astype(jnp.bfloat16)
    # layer5 + relu
    h = jnp.dot(w3_ref[...], h, preferred_element_type=f32) + b3_ref[...]
    h = jnp.maximum(h, 0.0).astype(jnp.bfloat16)
    # layer6 logits (softmax over dim=0 happens in the wrapper)
    logits = jnp.dot(w4_ref[...], h, preferred_element_type=f32) + b4_ref[...]
    o_ref[...] = logits[: o_ref.shape[0], :].astype(o_ref.dtype)


def _pack_params(params):
    """Zero-pad every layer to 128 output rows, transpose, cast weights to bf16."""
    ws = [params["w1"], params["w2"], params["w3"], params["w4"]]
    bs = [params["b1"], params["b2"], params["b3"], params["b4"]]
    in_dim = ws[0].shape[0]
    out_dim = ws[-1].shape[1]
    p1 = max(16, _round_up(in_dim, 16))        # bf16 sublane packing is 16
    out_rows = _round_up(out_dim, 8)

    w_slabs, b_cols = [], []
    for idx, (w, b) in enumerate(zip(ws, bs)):
        fan_in, fan_out = w.shape
        assert fan_out <= _LANE, "hidden/output width must be <= 128"
        k = p1 if idx == 0 else _LANE
        wt = jnp.zeros((_LANE, k), jnp.float32).at[:fan_out, :fan_in].set(w.T)
        w_slabs.append(wt.astype(jnp.bfloat16))
        bc = jnp.zeros((_LANE, 1), jnp.float32).at[:fan_out, 0].set(b.reshape(-1))
        b_cols.append(bc)
    return w_slabs, b_cols, p1, in_dim, out_dim, out_rows


def _choose_tile(batch, tile_b):
    """Batch tile: multiple of 128, <= tile_b, >= 2 grid steps when batch > 128
    (v7x megacore), last-tile padding waste < 2*128 rows."""
    tile_b = max(128, _round_up(tile_b, 128))
    n_tiles = max(1, -(-batch // tile_b))
    if batch > 128:
        n_tiles = max(n_tiles, 2)
    tb = min(tile_b, _round_up(-(-batch // n_tiles), 128))
    b_pad = _round_up(batch, tb)
    return tb, b_pad


@functools.partial(jax.jit, static_argnames=("tile_b",))
def feedforward_nn(obs, params, *, tile_b=2048):
    """Forward pass matching the PyTorch module (softmax over dim=0)."""
    squeeze = obs.ndim == 1
    obs2 = obs[None, :] if squeeze else obs
    B, in_dim_obs = obs2.shape

    w_slabs, b_cols, p1, in_dim, out_dim, out_rows = _pack_params(params)
    assert in_dim_obs == in_dim, "obs feature dim must match layer1 fan_in"

    tb, b_pad = _choose_tile(B, tile_b)
    grid = (b_pad // tb,)

    # obs^T in bf16; pad feature rows to p1 and batch lanes to b_pad.
    # (pad fuses with the transpose/cast — no separate zero-fill pass over obs.)
    obs_t = jnp.transpose(obs2).astype(jnp.bfloat16)             # (in_dim, B)
    obs_t = jnp.pad(obs_t, ((0, p1 - in_dim), (0, b_pad - B)))

    logits_pad = pl.pallas_call(
        _mlp_logits_kernel,
        out_shape=jax.ShapeDtypeStruct((out_rows, b_pad), jnp.float32),
        grid=grid,
        in_specs=[
            pl.BlockSpec((p1, tb), lambda i: (0, i)),            # obs^T: batch-tiled on lanes
            pl.BlockSpec(w_slabs[0].shape, lambda i: (0, 0)),    # weights: VMEM-resident
            pl.BlockSpec(w_slabs[1].shape, lambda i: (0, 0)),
            pl.BlockSpec(w_slabs[2].shape, lambda i: (0, 0)),
            pl.BlockSpec(w_slabs[3].shape, lambda i: (0, 0)),
            pl.BlockSpec(b_cols[0].shape, lambda i: (0, 0)),     # biases: VMEM-resident
            pl.BlockSpec(b_cols[1].shape, lambda i: (0, 0)),
            pl.BlockSpec(b_cols[2].shape, lambda i: (0, 0)),
            pl.BlockSpec(b_cols[3].shape, lambda i: (0, 0)),
        ],
        out_specs=pl.BlockSpec((out_rows, tb), lambda i: (0, i)),  # lane-dense logits
        compiler_params=pltpu.CompilerParams(
            dimension_semantics=("parallel",)),                   # v7x megacore sharding
    )(obs_t, *w_slabs, *b_cols)

    # dim=0 softmax couples all batch rows -> do it once, outside the tiled kernel,
    # on the tiny (out_dim, B) logits. Batch is the lane axis here (axis=1).
    logits = logits_pad[:out_dim, :B]
    if squeeze:
        return jax.nn.softmax(logits[:, 0], axis=0)
    return jnp.transpose(jax.nn.softmax(logits, axis=1))


def init_params(key, in_dim, out_dim):
    """Deterministic init mirroring nn.Linear default (U(-1/sqrt(fan_in), +1/sqrt(fan_in)))."""
    dims = [(in_dim, 64), (64, 32), (32, 24), (24, out_dim)]
    params = {}
    for idx, (fan_in, fan_out) in enumerate(dims, start=1):
        key, kw, kb = jax.random.split(key, 3)
        bound = 1.0 / jnp.sqrt(float(fan_in))
        # stored as [in, out] so the reference does x @ W (== torch's x @ W.T)
        params[f"w{idx}"] = jax.random.uniform(
            kw, (fan_in, fan_out), jnp.float32, minval=-bound, maxval=bound)
        params[f"b{idx}"] = jax.random.uniform(
            kb, (1, fan_out), jnp.float32, minval=-bound, maxval=bound)
    return params


def reference_forward(obs, params):
    """Pure-JAX f32 reference for correctness checking."""
    h = obs
    for idx in range(1, 4):
        h = jnp.maximum(h @ params[f"w{idx}"] + params[f"b{idx}"], 0.0)
    logits = h @ params["w4"] + params["b4"]
    return jax.nn.softmax(logits, axis=0)  # dim=0, as in the PyTorch module


if __name__ == "__main__":
    key = jax.random.PRNGKey(0)
    in_dim, out_dim = 16, 6

    key, k_obs, k_par, k_obs2 = jax.random.split(key, 4)
    params = init_params(k_par, in_dim, out_dim)

    # Small batch consistent with the module.
    B = 8
    obs = jax.random.normal(k_obs, (B, in_dim), jnp.float32)
    out = jax.block_until_ready(feedforward_nn(obs, params))
    ref = reference_forward(obs, params)
    assert out.shape == (B, out_dim)
    # bf16 matmul operands -> relaxed tolerance vs the f32 reference.
    assert jnp.allclose(out, ref, atol=2e-2, rtol=2e-2), "mismatch vs reference (B=8)"
    # softmax is over the batch axis (dim=0): columns sum to 1.
    assert jnp.allclose(jnp.sum(out, axis=0), jnp.ones((out_dim,)), atol=1e-5)

    # Larger, non-multiple-of-tile batch: multi-step parallel grid + lane padding.
    B2 = 1037
    obs2 = jax.random.normal(k_obs2, (B2, in_dim), jnp.float32)
    out2 = jax.block_until_ready(feedforward_nn(obs2, params))
    ref2 = reference_forward(obs2, params)
    assert out2.shape == (B2, out_dim)
    assert jnp.allclose(out2, ref2, atol=2e-2, rtol=2e-2), "mismatch vs reference (B=1037)"
    assert jnp.allclose(jnp.sum(out2, axis=0), jnp.ones((out_dim,)), atol=1e-4)

    # Single (1-D) observation, as used by sample_action: softmax over out_dim.
    out1 = jax.block_until_ready(feedforward_nn(obs[0], params))
    assert out1.shape == (out_dim,)
    assert jnp.allclose(jnp.sum(out1), 1.0, atol=1e-5)

    print("KERNEL_OK")
</pallas_src>

<mosaic_0001>
module attributes {stable_mosaic.version = 11 : i64} {
  func.func @_mlp_logits_kernel(%arg0: i32, %arg1: memref<16x128xbf16, #tpu.memory_space<vmem>>, %arg2: memref<128x16xbf16, #tpu.memory_space<vmem>>, %arg3: memref<128x128xbf16, #tpu.memory_space<vmem>>, %arg4: memref<128x128xbf16, #tpu.memory_space<vmem>>, %arg5: memref<128x128xbf16, #tpu.memory_space<vmem>>, %arg6: memref<128x1xf32, #tpu.memory_space<vmem>>, %arg7: memref<128x1xf32, #tpu.memory_space<vmem>>, %arg8: memref<128x1xf32, #tpu.memory_space<vmem>>, %arg9: memref<128x1xf32, #tpu.memory_space<vmem>>, %arg10: memref<8x128xf32, #tpu.memory_space<vmem>>) attributes {dimension_semantics = [#tpu.dimension_semantics<parallel>], iteration_bounds = array<i64: 1>, scalar_prefetch = 0 : i64, scratch_operands = 0 : i64, tpu.core_type = #tpu.core_type<tc>, window_params = [{transform_indices = @transform_0, window_bounds = array<i64: 16, 128>}, {pipeline_mode = #tpu.pipeline_mode<synchronous>, transform_indices = @transform_1, window_bounds = array<i64: 128, 16>}, {pipeline_mode = #tpu.pipeline_mode<synchronous>, transform_indices = @transform_2, window_bounds = array<i64: 128, 128>}, {pipeline_mode = #tpu.pipeline_mode<synchronous>, transform_indices = @transform_3, window_bounds = array<i64: 128, 128>}, {pipeline_mode = #tpu.pipeline_mode<synchronous>, transform_indices = @transform_4, window_bounds = array<i64: 128, 128>}, {pipeline_mode = #tpu.pipeline_mode<synchronous>, transform_indices = @transform_5, window_bounds = array<i64: 128, 1>}, {pipeline_mode = #tpu.pipeline_mode<synchronous>, transform_indices = @transform_6, window_bounds = array<i64: 128, 1>}, {pipeline_mode = #tpu.pipeline_mode<synchronous>, transform_indices = @transform_7, window_bounds = array<i64: 128, 1>}, {pipeline_mode = #tpu.pipeline_mode<synchronous>, transform_indices = @transform_8, window_bounds = array<i64: 128, 1>}, {transform_indices = @transform_9, window_bounds = array<i64: 8, 128>}]} {
    %c0 = arith.constant 0 : index
    %c0_0 = arith.constant 0 : index
    %0 = vector.load %arg1[%c0, %c0_0] : memref<16x128xbf16, #tpu.memory_space<vmem>>, vector<16x128xbf16>
    %c0_1 = arith.constant 0 : index
    %c0_2 = arith.constant 0 : index
    %1 = vector.load %arg2[%c0_1, %c0_2] : memref<128x16xbf16, #tpu.memory_space<vmem>>, vector<128x16xbf16>
    %cst = arith.constant dense<0.000000e+00> : vector<128x128xf32>
    %2 = tpu.matmul %1, %0, %cst {dimension_numbers = #tpu.dot_dimension_numbers<[1], [0], [0], [1], [0, 0, 1, 1], [], []>} : vector<128x16xbf16>, vector<16x128xbf16>, vector<128x128xf32> -> vector<128x128xf32>
    %c0_3 = arith.constant 0 : index
    %c0_4 = arith.constant 0 : index
    %3 = vector.load %arg6[%c0_3, %c0_4] : memref<128x1xf32, #tpu.memory_space<vmem>>, vector<128x1xf32>
    %4 = vector.broadcast %3 : vector<128x1xf32> to vector<128x128xf32>
    %5 = arith.addf %2, %4 : vector<128x128xf32>
    %cst_5 = arith.constant 0.000000e+00 : f32
    %6 = vector.broadcast %cst_5 : f32 to vector<128x128xf32>
    %7 = arith.maximumf %5, %6 : vector<128x128xf32>
    %8 = arith.truncf %7 : vector<128x128xf32> to vector<128x128xbf16>
    %c0_6 = arith.constant 0 : index
    %c0_7 = arith.constant 0 : index
    %9 = vector.load %arg3[%c0_6, %c0_7] : memref<128x128xbf16, #tpu.memory_space<vmem>>, vector<128x128xbf16>
    %cst_8 = arith.constant dense<0.000000e+00> : vector<128x128xf32>
    %10 = tpu.matmul %9, %8, %cst_8 {dimension_numbers = #tpu.dot_dimension_numbers<[1], [0], [0], [1], [0, 0, 1, 1], [], []>} : vector<128x128xbf16>, vector<128x128xbf16>, vector<128x128xf32> -> vector<128x128xf32>
    %c0_9 = arith.constant 0 : index
    %c0_10 = arith.constant 0 : index
    %11 = vector.load %arg7[%c0_9, %c0_10] : memref<128x1xf32, #tpu.memory_space<vmem>>, vector<128x1xf32>
    %12 = vector.broadcast %11 : vector<128x1xf32> to vector<128x128xf32>
    %13 = arith.addf %10, %12 : vector<128x128xf32>
    %cst_11 = arith.constant 0.000000e+00 : f32
    %14 = vector.broadcast %cst_11 : f32 to vector<128x128xf32>
    %15 = arith.maximumf %13, %14 : vector<128x128xf32>
    %16 = arith.truncf %15 : vector<128x128xf32> to vector<128x128xbf16>
    %c0_12 = arith.constant 0 : index
    %c0_13 = arith.constant 0 : index
    %17 = vector.load %arg4[%c0_12, %c0_13] : memref<128x128xbf16, #tpu.memory_space<vmem>>, vector<128x128xbf16>
    %cst_14 = arith.constant dense<0.000000e+00> : vector<128x128xf32>
    %18 = tpu.matmul %17, %16, %cst_14 {dimension_numbers = #tpu.dot_dimension_numbers<[1], [0], [0], [1], [0, 0, 1, 1], [], []>} : vector<128x128xbf16>, vector<128x128xbf16>, vector<128x128xf32> -> vector<128x128xf32>
    %c0_15 = arith.constant 0 : index
    %c0_16 = arith.constant 0 : index
    %19 = vector.load %arg8[%c0_15, %c0_16] : memref<128x1xf32, #tpu.memory_space<vmem>>, vector<128x1xf32>
    %20 = vector.broadcast %19 : vector<128x1xf32> to vector<128x128xf32>
    %21 = arith.addf %18, %20 : vector<128x128xf32>
    %cst_17 = arith.constant 0.000000e+00 : f32
    %22 = vector.broadcast %cst_17 : f32 to vector<128x128xf32>
    %23 = arith.maximumf %21, %22 : vector<128x128xf32>
    %24 = arith.truncf %23 : vector<128x128xf32> to vector<128x128xbf16>
    %c0_18 = arith.constant 0 : index
    %c0_19 = arith.constant 0 : index
    %25 = vector.load %arg5[%c0_18, %c0_19] : memref<128x128xbf16, #tpu.memory_space<vmem>>, vector<128x128xbf16>
    %cst_20 = arith.constant dense<0.000000e+00> : vector<128x128xf32>
    %26 = tpu.matmul %25, %24, %cst_20 {dimension_numbers = #tpu.dot_dimension_numbers<[1], [0], [0], [1], [0, 0, 1, 1], [], []>} : vector<128x128xbf16>, vector<128x128xbf16>, vector<128x128xf32> -> vector<128x128xf32>
    %c0_21 = arith.constant 0 : index
    %c0_22 = arith.constant 0 : index
    %27 = vector.load %arg9[%c0_21, %c0_22] : memref<128x1xf32, #tpu.memory_space<vmem>>, vector<128x1xf32>
    %28 = vector.broadcast %27 : vector<128x1xf32> to vector<128x128xf32>
    %29 = arith.addf %26, %28 : vector<128x128xf32>
    %30 = vector.extract_strided_slice %29 {offsets = [0, 0], sizes = [8, 128], strides = [1, 1]} : vector<128x128xf32> to vector<8x128xf32>
    %c0_23 = arith.constant 0 : index
    %c0_24 = arith.constant 0 : index
    %31 = vector.load %arg10[%c0_23, %c0_24] : memref<8x128xf32, #tpu.memory_space<vmem>>, vector<8x128xf32>
    tpu.vector_store %arg10[%c0_23, %c0_24], %30 {strides = array<i32>} : memref<8x128xf32, #tpu.memory_space<vmem>>, vector<8x128xf32>,
    return
  }
  func.func @transform_0(%arg0: i32) -> (i32, i32) {
    %c0_i32 = arith.constant 0 : i32
    %c0_i32_0 = arith.constant 0 : i32
    return %c0_i32, %arg0 : i32, i32
  }
  func.func @transform_1(%arg0: i32) -> (i32, i32) {
    %c0_i32 = arith.constant 0 : i32
    %c0_i32_0 = arith.constant 0 : i32
    %c0_i32_1 = arith.constant 0 : i32
    return %c0_i32, %c0_i32_0 : i32, i32
  }
  func.func @transform_2(%arg0: i32) -> (i32, i32) {
    %c0_i32 = arith.constant 0 : i32
    %c0_i32_0 = arith.constant 0 : i32
    %c0_i32_1 = arith.constant 0 : i32
    return %c0_i32, %c0_i32_0 : i32, i32
  }
  func.func @transform_3(%arg0: i32) -> (i32, i32) {
    %c0_i32 = arith.constant 0 : i32
    %c0_i32_0 = arith.constant 0 : i32
    %c0_i32_1 = arith.constant 0 : i32
    return %c0_i32, %c0_i32_0 : i32, i32
  }
  func.func @transform_4(%arg0: i32) -> (i32, i32) {
    %c0_i32 = arith.constant 0 : i32
    %c0_i32_0 = arith.constant 0 : i32
    %c0_i32_1 = arith.constant 0 : i32
    return %c0_i32, %c0_i32_0 : i32, i32
  }
  func.func @transform_5(%arg0: i32) -> (i32, i32) {
    %c0_i32 = arith.constant 0 : i32
    %c0_i32_0 = arith.constant 0 : i32
    %c0_i32_1 = arith.constant 0 : i32
    return %c0_i32, %c0_i32_0 : i32, i32
  }
  func.func @transform_6(%arg0: i32) -> (i32, i32) {
    %c0_i32 = arith.constant 0 : i32
    %c0_i32_0 = arith.constant 0 : i32
    %c0_i32_1 = arith.constant 0 : i32
    return %c0_i32, %c0_i32_0 : i32, i32
  }
  func.func @transform_7(%arg0: i32) -> (i32, i32) {
    %c0_i32 = arith.constant 0 : i32
    %c0_i32_0 = arith.constant 0 : i32
    %c0_i32_1 = arith.constant 0 : i32
    return %c0_i32, %c0_i32_0 : i32, i32
  }
  func.func @transform_8(%arg0: i32) -> (i32, i32) {
    %c0_i32 = arith.constant 0 : i32
    %c0_i32_0 = arith.constant 0 : i32
    %c0_i32_1 = arith.constant 0 : i32
    return %c0_i32, %c0_i32_0 : i32, i32
  }
  func.func @transform_9(%arg0: i32) -> (i32, i32) {
    %c0_i32 = arith.constant 0 : i32
    %c0_i32_0 = arith.constant 0 : i32
    return %c0_i32, %arg0 : i32, i32
  }
}

</mosaic_0001>

<llo_original>
// kernel: feedforward_nn.1
$region0: #{feedforward_nn.1}
  #allocation0 [shape = 'u32[]', space=smem, size = 0x4, offset = 0x4, fixed_abs, tag = 'smem constant byte address 0x4 - core index']
  #allocation1 [shape = 'u32[72,128]{1,0:T(1,128)}', space=vmem, size = 0x9000, scoped, tag = 'internal scratch']
  %s0 = inlined_call_operand.vmem [shape: bf16[16,128], index: 0, kind: input, shape index: {}]
  %s1 = inlined_call_operand.vmem [shape: bf16[128,16], index: 1, kind: input, shape index: {}]
  %s2 = inlined_call_operand.vmem [shape: bf16[128,128], index: 2, kind: input, shape index: {}]
  %s3 = inlined_call_operand.vmem [shape: bf16[128,128], index: 3, kind: input, shape index: {}]
  %s4 = inlined_call_operand.vmem [shape: bf16[128,128], index: 4, kind: input, shape index: {}]
  %s5 = inlined_call_operand.vmem [shape: f32[128,1], index: 5, kind: input, shape index: {}]
  %s6 = inlined_call_operand.vmem [shape: f32[128,1], index: 6, kind: input, shape index: {}]
  %s7 = inlined_call_operand.vmem [shape: f32[128,1], index: 7, kind: input, shape index: {}]
  %s8 = inlined_call_operand.vmem [shape: f32[128,1], index: 8, kind: input, shape index: {}]
  %s9 = inlined_call_operand.vmem [shape: f32[8,128], index: 9, kind: output, shape index: {}]
  %s10 = sld [smem:[#allocation0]]
  $region46: #{feedforward_nn.1} parent=0
    _
  %s12 = ssub.s32 1, %s10
  %s13 = scalar_select 0, %s12, %s10
  // Predicated region
  $region2: #{feedforward_nn.1} parent=0 // pred_check
    _
  $region3: #{feedforward_nn.1} parent=0 // pred_check_branch
    %15 = sbr.rel (0) target = $region5
  $region4: #{feedforward_nn.1} parent=0 // pred_region
    _
  $region5: #{feedforward_nn.1} parent=0 // pred_fallthru
    _
  // Predicated region
  $region6: #{feedforward_nn.1} parent=0 // pred_check
    _
  $region7: #{feedforward_nn.1} parent=0 // pred_check_branch
    %17 = sbr.rel (0) target = $region9
  $region8: #{feedforward_nn.1} parent=0 // pred_region
    _
  $region9: #{feedforward_nn.1} parent=0 // pred_fallthru
    _
  // Predicated region
  $region10: #{feedforward_nn.1} parent=0 // pred_check
    _
  $region11: #{feedforward_nn.1} parent=0 // pred_check_branch
    %19 = sbr.rel (0) target = $region13
  $region12: #{feedforward_nn.1} parent=0 // pred_region
    _
  $region13: #{feedforward_nn.1} parent=0 // pred_fallthru
    _
  // Predicated region
  $region14: #{feedforward_nn.1} parent=0 // pred_check
    _
  $region15: #{feedforward_nn.1} parent=0 // pred_check_branch
    %21 = sbr.rel (0) target = $region17
  $region16: #{feedforward_nn.1} parent=0 // pred_region
    _
  $region17: #{feedforward_nn.1} parent=0 // pred_fallthru
    _
  // Predicated region
  $region18: #{feedforward_nn.1} parent=0 // pred_check
    _
  $region19: #{feedforward_nn.1} parent=0 // pred_check_branch
    %23 = sbr.rel (0) target = $region21
  $region20: #{feedforward_nn.1} parent=0 // pred_region
    _
  $region21: #{feedforward_nn.1} parent=0 // pred_fallthru
    _
  // Predicated region
  $region22: #{feedforward_nn.1} parent=0 // pred_check
    _
  $region23: #{feedforward_nn.1} parent=0 // pred_check_branch
    %25 = sbr.rel (0) target = $region25
  $region24: #{feedforward_nn.1} parent=0 // pred_region
    _
  $region25: #{feedforward_nn.1} parent=0 // pred_fallthru
    _
  // Predicated region
  $region26: #{feedforward_nn.1} parent=0 // pred_check
    _
  $region27: #{feedforward_nn.1} parent=0 // pred_check_branch
    %27 = sbr.rel (0) target = $region29
  $region28: #{feedforward_nn.1} parent=0 // pred_region
    _
  $region29: #{feedforward_nn.1} parent=0 // pred_fallthru
    _
  // Predicated region
  $region30: #{feedforward_nn.1} parent=0 // pred_check
    _
  $region31: #{feedforward_nn.1} parent=0 // pred_check_branch
    %29 = sbr.rel (0) target = $region33
  $region32: #{feedforward_nn.1} parent=0 // pred_region
    _
  $region33: #{feedforward_nn.1} parent=0 // pred_fallthru
    _
  // Predicated region
  $region34: #{feedforward_nn.1} parent=0 // pred_check
    _
  $region35: #{feedforward_nn.1} parent=0 // pred_check_branch
    %31 = sbr.rel (0) target = $region37
  $region36: #{feedforward_nn.1} parent=0 // pred_region
    _
  $region37: #{feedforward_nn.1} parent=0 // pred_fallthru
    _
  %v33 = vld [vmem:[%s0] sm:$0xf]
  %v34 = vld [vmem:[%s0 + $0x4] sm:$0xf]
  %v35 = vld [vmem:[%s1] sm:$0xf]
  %v36 = vld [vmem:[%s1 + $0x4] sm:$0xf]
  %v37 = vld [vmem:[%s1 + $0x8] sm:$0xf]
  %v38 = vld [vmem:[%s1 + $0xc] sm:$0xf]
  %v39 = vld [vmem:[%s1 + $0x10] sm:$0xf]
  %v40 = vld [vmem:[%s1 + $0x14] sm:$0xf]
  %v41 = vld [vmem:[%s1 + $0x18] sm:$0xf]
  %v42 = vld [vmem:[%s1 + $0x1c] sm:$0xf]
  %v43 = vld [vmem:[%s1 + $0x20] sm:$0xf]
  %v44 = vld [vmem:[%s1 + $0x24] sm:$0xf]
  %v45 = vld [vmem:[%s1 + $0x28] sm:$0xf]
  %v46 = vld [vmem:[%s1 + $0x2c] sm:$0xf]
  %v47 = vld [vmem:[%s1 + $0x30] sm:$0xf]
  %v48 = vld [vmem:[%s1 + $0x34] sm:$0xf]
  %v49 = vld [vmem:[%s1 + $0x38] sm:$0xf]
  %v50 = vld [vmem:[%s1 + $0x3c] sm:$0xf]
  %v51 = vld [vmem:[%s5] sm:$0xff]
  %v52 = vld [vmem:[%s5 + $0x8] sm:$0xff]
  %v53 = vld [vmem:[%s5 + $0x10] sm:$0xff]
  %v54 = vld [vmem:[%s5 + $0x18] sm:$0xff]
  %v55 = vld [vmem:[%s5 + $0x20] sm:$0xff]
  %v56 = vld [vmem:[%s5 + $0x28] sm:$0xff]
  %v57 = vld [vmem:[%s5 + $0x30] sm:$0xff]
  %v58 = vld [vmem:[%s5 + $0x38] sm:$0xff]
  %v59 = vld [vmem:[%s5 + $0x40] sm:$0xff]
  %v60 = vld [vmem:[%s5 + $0x48] sm:$0xff]
  %v61 = vld [vmem:[%s5 + $0x50] sm:$0xff]
  %v62 = vld [vmem:[%s5 + $0x58] sm:$0xff]
  %v63 = vld [vmem:[%s5 + $0x60] sm:$0xff]
  %v64 = vld [vmem:[%s5 + $0x68] sm:$0xff]
  %v65 = vld [vmem:[%s5 + $0x70] sm:$0xff]
  %v66 = vld [vmem:[%s5 + $0x78] sm:$0xff]
  %68 = vset.pattern.permute.xlu0 0
  %69 = vperm.xlu0 %68, %v51
  %v70 = vpop.permute.xlu0 %69
  %73 = vset.pattern.permute.xlu0 0
  %74 = vperm.xlu0 %73, %v52
  %v75 = vpop.permute.xlu0 %74
  %78 = vset.pattern.permute.xlu0 0
  %79 = vperm.xlu0 %78, %v53
  %v80 = vpop.permute.xlu0 %79
  %83 = vset.pattern.permute.xlu0 0
  %84 = vperm.xlu0 %83, %v54
  %v85 = vpop.permute.xlu0 %84
  %88 = vset.pattern.permute.xlu0 0
  %89 = vperm.xlu0 %88, %v55
  %v90 = vpop.permute.xlu0 %89
  %93 = vset.pattern.permute.xlu0 0
  %94 = vperm.xlu0 %93, %v56
  %v95 = vpop.permute.xlu0 %94
  %98 = vset.pattern.permute.xlu0 0
  %99 = vperm.xlu0 %98, %v57
  %v100 = vpop.permute.xlu0 %99
  %103 = vset.pattern.permute.xlu0 0
  %104 = vperm.xlu0 %103, %v58
  %v105 = vpop.permute.xlu0 %104
  %108 = vset.pattern.permute.xlu0 0
  %109 = vperm.xlu0 %108, %v59
  %v110 = vpop.permute.xlu0 %109
  %113 = vset.pattern.permute.xlu0 0
  %114 = vperm.xlu0 %113, %v60
  %v115 = vpop.permute.xlu0 %114
  %118 = vset.pattern.permute.xlu0 0
  %119 = vperm.xlu0 %118, %v61
  %v120 = vpop.permute.xlu0 %119
  %123 = vset.pattern.permute.xlu0 0
  %124 = vperm.xlu0 %123, %v62
  %v125 = vpop.permute.xlu0 %124
  %128 = vset.pattern.permute.xlu0 0
  %129 = vperm.xlu0 %128, %v63
  %v130 = vpop.permute.xlu0 %129
  %133 = vset.pattern.permute.xlu0 0
  %134 = vperm.xlu0 %133, %v64
  %v135 = vpop.permute.xlu0 %134
  %138 = vset.pattern.permute.xlu0 0
  %139 = vperm.xlu0 %138, %v65
  %v140 = vpop.permute.xlu0 %139
  %143 = vset.pattern.permute.xlu0 0
  %144 = vperm.xlu0 %143, %v66
  %v145 = vpop.permute.xlu0 %144
  %v163 = vunpack.c.l.b16 %v35
  %v164 = vunpack.c.l.b16 %v36
  %v165 = vunpack.c.l.b16 %v37
  %v166 = vunpack.c.l.b16 %v38
  %v167 = vunpack.c.l.b16 %v39
  %v168 = vunpack.c.l.b16 %v40
  %v169 = vunpack.c.l.b16 %v41
  %v170 = vunpack.c.l.b16 %v42
  %v171 = vunpack.c.l.b16 %v43
  %v172 = vunpack.c.l.b16 %v44
  %v173 = vunpack.c.l.b16 %v45
  %v174 = vunpack.c.l.b16 %v46
  %v175 = vunpack.c.l.b16 %v47
  %v176 = vunpack.c.l.b16 %v48
  %v177 = vunpack.c.l.b16 %v49
  %v178 = vunpack.c.l.b16 %v50
  %v179 = vpack.c.b16 %v164, %v163
  %v180 = vpack.c.b16 %v166, %v165
  %v181 = vpack.c.b16 %v168, %v167
  %v182 = vpack.c.b16 %v170, %v169
  %v183 = vpack.c.b16 %v172, %v171
  %v184 = vpack.c.b16 %v174, %v173
  %v185 = vpack.c.b16 %v176, %v175
  %v186 = vpack.c.b16 %v178, %v177
  %v189 = vunpack.c.l.b16 %v33
  %v190 = vunpack.c.l.b16 %v34
  %v191 = vpack.c.b16 %v190, %v189
  %vm193 = vcmask 130048
  %v195 = vsel %vm193, %v179, 0
  %v198 = vsel %vm193, %v180, 0
  %v201 = vsel %vm193, %v181, 0
  %v204 = vsel %vm193, %v182, 0
  %v207 = vsel %vm193, %v183, 0
  %v210 = vsel %vm193, %v184, 0
  %v213 = vsel %vm193, %v185, 0
  %v216 = vsel %vm193, %v186, 0
  %218 = vmatpush.bf16.msra.mxu0 0
  %219 = vmatpush.bf16.msra.mxu0 0
  %220 = vmatpush.bf16.msra.mxu0 0
  %221 = vmatpush.bf16.msra.mxu0 0
  %222 = vmatpush.bf16.msra.mxu0 0
  %223 = vmatpush.bf16.msra.mxu0 0
  %224 = vmatpush.bf16.msra.mxu0 0
  %225 = vmatpush.bf16.msra.mxu0 %v191
  %226 = vmatmul.bf16.gmra.mxu0 %v195
  %v227 = vpop.f32.mrf.mxu0
  %v228 = vadd.f32 %v70, %v227
  %v229 = vpop.f32.mrf.mxu0
  %v230 = vadd.f32 %v75, %v229
  %231 = vmatmul.bf16.gmra.mxu0 %v198
  %v232 = vpop.f32.mrf.mxu0
  %v233 = vadd.f32 %v80, %v232
  %v234 = vpop.f32.mrf.mxu0
  %v235 = vadd.f32 %v85, %v234
  %236 = vmatmul.bf16.gmra.mxu0 %v201
  %v237 = vpop.f32.mrf.mxu0
  %v238 = vadd.f32 %v90, %v237
  %v239 = vpop.f32.mrf.mxu0
  %v240 = vadd.f32 %v95, %v239
  %241 = vmatmul.bf16.gmra.mxu0 %v204
  %v242 = vpop.f32.mrf.mxu0
  %v243 = vadd.f32 %v100, %v242
  %v244 = vpop.f32.mrf.mxu0
  %v245 = vadd.f32 %v105, %v244
  %246 = vmatmul.bf16.gmra.mxu0 %v207
  %v247 = vpop.f32.mrf.mxu0
  %v248 = vadd.f32 %v110, %v247
  %v249 = vpop.f32.mrf.mxu0
  %v250 = vadd.f32 %v115, %v249
  %251 = vmatmul.bf16.gmra.mxu0 %v210
  %v252 = vpop.f32.mrf.mxu0
  %v253 = vadd.f32 %v120, %v252
  %v254 = vpop.f32.mrf.mxu0
  %v255 = vadd.f32 %v125, %v254
  %256 = vmatmul.bf16.gmra.mxu0 %v213
  %v257 = vpop.f32.mrf.mxu0
  %v258 = vadd.f32 %v130, %v257
  %v259 = vpop.f32.mrf.mxu0
  %v260 = vadd.f32 %v135, %v259
  %261 = vmatmul.bf16.gmra.mxu0 %v216
  %v262 = vpop.f32.mrf.mxu0
  %v263 = vadd.f32 %v140, %v262
  %v264 = vpop.f32.mrf.mxu0
  %v265 = vadd.f32 %v145, %v264
  %266 = vdwg.mxu0
  %v267 = vmax.f32 %v228, 0.0
  %v268 = vmax.f32 %v230, 0.0
  %v269 = vmax.f32 %v233, 0.0
  %v270 = vmax.f32 %v235, 0.0
  %v271 = vmax.f32 %v238, 0.0
  %v272 = vmax.f32 %v240, 0.0
  %v273 = vmax.f32 %v243, 0.0
  %v274 = vmax.f32 %v245, 0.0
  %v275 = vmax.f32 %v248, 0.0
  %v276 = vmax.f32 %v250, 0.0
  %v277 = vmax.f32 %v253, 0.0
  %v278 = vmax.f32 %v255, 0.0
  %v279 = vmax.f32 %v258, 0.0
  %v280 = vmax.f32 %v260, 0.0
  %v281 = vmax.f32 %v263, 0.0
  %v282 = vmax.f32 %v265, 0.0
  %v283 = vpack.c.bf16 %v268, %v267
  %v284 = vpack.c.bf16 %v270, %v269
  %v285 = vpack.c.bf16 %v272, %v271
  %v286 = vpack.c.bf16 %v274, %v273
  %v287 = vpack.c.bf16 %v276, %v275
  %v288 = vpack.c.bf16 %v278, %v277
  %v289 = vpack.c.bf16 %v280, %v279
  %v290 = vpack.c.bf16 %v282, %v281
  %v291 = vld [vmem:[%s2] sm:$0xf]
  %v292 = vld [vmem:[%s2 + $0x4] sm:$0xf]
  %v293 = vld [vmem:[%s2 + $0x8] sm:$0xf]
  %v294 = vld [vmem:[%s2 + $0xc] sm:$0xf]
  %v295 = vld [vmem:[%s2 + $0x10] sm:$0xf]
  %v296 = vld [vmem:[%s2 + $0x14] sm:$0xf]
  %v297 = vld [vmem:[%s2 + $0x18] sm:$0xf]
  %v298 = vld [vmem:[%s2 + $0x1c] sm:$0xf]
  %v299 = vld [vmem:[%s2 + $0x20] sm:$0xf]
  %v300 = vld [vmem:[%s2 + $0x24] sm:$0xf]
  %v301 = vld [vmem:[%s2 + $0x28] sm:$0xf]
  %v302 = vld [vmem:[%s2 + $0x2c] sm:$0xf]
  %v303 = vld [vmem:[%s2 + $0x30] sm:$0xf]
  %v304 = vld [vmem:[%s2 + $0x34] sm:$0xf]
  %v305 = vld [vmem:[%s2 + $0x38] sm:$0xf]
  %v306 = vld [vmem:[%s2 + $0x3c] sm:$0xf]
  %v307 = vld [vmem:[%s6] sm:$0xff]
  %v308 = vld [vmem:[%s6 + $0x8] sm:$0xff]
  %v309 = vld [vmem:[%s6 + $0x10] sm:$0xff]
  %v310 = vld [vmem:[%s6 + $0x18] sm:$0xff]
  %v311 = vld [vmem:[%s6 + $0x20] sm:$0xff]
  %v312 = vld [vmem:[%s6 + $0x28] sm:$0xff]
  %v313 = vld [vmem:[%s6 + $0x30] sm:$0xff]
  %v314 = vld [vmem:[%s6 + $0x38] sm:$0xff]
  %v315 = vld [vmem:[%s6 + $0x40] sm:$0xff]
  %v316 = vld [vmem:[%s6 + $0x48] sm:$0xff]
  %v317 = vld [vmem:[%s6 + $0x50] sm:$0xff]
  %v318 = vld [vmem:[%s6 + $0x58] sm:$0xff]
  %v319 = vld [vmem:[%s6 + $0x60] sm:$0xff]
  %v320 = vld [vmem:[%s6 + $0x68] sm:$0xff]
  %v321 = vld [vmem:[%s6 + $0x70] sm:$0xff]
  %v322 = vld [vmem:[%s6 + $0x78] sm:$0xff]
  %324 = vset.pattern.permute.xlu0 0
  %325 = vperm.xlu0 %324, %v307
  %v326 = vpop.permute.xlu0 %325
  %329 = vset.pattern.permute.xlu0 0
  %330 = vperm.xlu0 %329, %v308
  %v331 = vpop.permute.xlu0 %330
  %334 = vset.pattern.permute.xlu0 0
  %335 = vperm.xlu0 %334, %v309
  %v336 = vpop.permute.xlu0 %335
  %339 = vset.pattern.permute.xlu0 0
  %340 = vperm.xlu0 %339, %v310
  %v341 = vpop.permute.xlu0 %340
  %344 = vset.pattern.permute.xlu0 0
  %345 = vperm.xlu0 %344, %v311
  %v346 = vpop.permute.xlu0 %345
  %349 = vset.pattern.permute.xlu0 0
  %350 = vperm.xlu0 %349, %v312
  %v351 = vpop.permute.xlu0 %350
  %354 = vset.pattern.permute.xlu0 0
  %355 = vperm.xlu0 %354, %v313
  %v356 = vpop.permute.xlu0 %355
  %359 = vset.pattern.permute.xlu0 0
  %360 = vperm.xlu0 %359, %v314
  %v361 = vpop.permute.xlu0 %360
  %364 = vset.pattern.permute.xlu0 0
  %365 = vperm.xlu0 %364, %v315
  %v366 = vpop.permute.xlu0 %365
  %369 = vset.pattern.permute.xlu0 0
  %370 = vperm.xlu0 %369, %v316
  %v371 = vpop.permute.xlu0 %370
  %374 = vset.pattern.permute.xlu0 0
  %375 = vperm.xlu0 %374, %v317
  %v376 = vpop.permute.xlu0 %375
  %379 = vset.pattern.permute.xlu0 0
  %380 = vperm.xlu0 %379, %v318
  %v381 = vpop.permute.xlu0 %380
  %384 = vset.pattern.permute.xlu0 0
  %385 = vperm.xlu0 %384, %v319
  %v386 = vpop.permute.xlu0 %385
  %389 = vset.pattern.permute.xlu0 0
  %390 = vperm.xlu0 %389, %v320
  %v391 = vpop.permute.xlu0 %390
  %394 = vset.pattern.permute.xlu0 0
  %395 = vperm.xlu0 %394, %v321
  %v396 = vpop.permute.xlu0 %395
  %399 = vset.pattern.permute.xlu0 0
  %400 = vperm.xlu0 %399, %v322
  %v401 = vpop.permute.xlu0 %400
  %v419 = vunpack.c.l.b16 %v291
  %v420 = vunpack.c.l.b16 %v292
  %v421 = vunpack.c.l.b16 %v293
  %v422 = vunpack.c.l.b16 %v294
  %v423 = vunpack.c.l.b16 %v295
  %v424 = vunpack.c.l.b16 %v296
  %v425 = vunpack.c.l.b16 %v297
  %v426 = vunpack.c.l.b16 %v298
  %v427 = vunpack.c.l.b16 %v299
  %v428 = vunpack.c.l.b16 %v300
  %v429 = vunpack.c.l.b16 %v301
  %v430 = vunpack.c.l.b16 %v302
  %v431 = vunpack.c.l.b16 %v303
  %v432 = vunpack.c.l.b16 %v304
  %v433 = vunpack.c.l.b16 %v305
  %v434 = vunpack.c.l.b16 %v306
  %v435 = vpack.c.b16 %v420, %v419
  %v436 = vpack.c.b16 %v422, %v421
  %v437 = vpack.c.b16 %v424, %v423
  %v438 = vpack.c.b16 %v426, %v425
  %v439 = vpack.c.b16 %v428, %v427
  %v440 = vpack.c.b16 %v430, %v429
  %v441 = vpack.c.b16 %v432, %v431
  %v442 = vpack.c.b16 %v434, %v433
  %451 = vmatpush.bf16.msra.mxu0 %v290
  %452 = vmatpush.bf16.msra.mxu0 %v289
  %453 = vmatpush.bf16.msra.mxu0 %v288
  %454 = vmatpush.bf16.msra.mxu0 %v287
  %455 = vmatpush.bf16.msra.mxu0 %v286
  %456 = vmatpush.bf16.msra.mxu0 %v285
  %457 = vmatpush.bf16.msra.mxu0 %v284
  %458 = vmatpush.bf16.msra.mxu0 %v283
  %459 = vmatmul.bf16.gmra.mxu0 %v435
  %v460 = vpop.f32.mrf.mxu0
  %v461 = vadd.f32 %v326, %v460
  %v462 = vpop.f32.mrf.mxu0
  %v463 = vadd.f32 %v331, %v462
  %464 = vmatmul.bf16.gmra.mxu0 %v436
  %v465 = vpop.f32.mrf.mxu0
  %v466 = vadd.f32 %v336, %v465
  %v467 = vpop.f32.mrf.mxu0
  %v468 = vadd.f32 %v341, %v467
  %469 = vmatmul.bf16.gmra.mxu0 %v437
  %v470 = vpop.f32.mrf.mxu0
  %v471 = vadd.f32 %v346, %v470
  %v472 = vpop.f32.mrf.mxu0
  %v473 = vadd.f32 %v351, %v472
  %474 = vmatmul.bf16.gmra.mxu0 %v438
  %v475 = vpop.f32.mrf.mxu0
  %v476 = vadd.f32 %v356, %v475
  %v477 = vpop.f32.mrf.mxu0
  %v478 = vadd.f32 %v361, %v477
  %479 = vmatmul.bf16.gmra.mxu0 %v439
  %v480 = vpop.f32.mrf.mxu0
  %v481 = vadd.f32 %v366, %v480
  %v482 = vpop.f32.mrf.mxu0
  %v483 = vadd.f32 %v371, %v482
  %484 = vmatmul.bf16.gmra.mxu0 %v440
  %v485 = vpop.f32.mrf.mxu0
  %v486 = vadd.f32 %v376, %v485
  %v487 = vpop.f32.mrf.mxu0
  %v488 = vadd.f32 %v381, %v487
  %489 = vmatmul.bf16.gmra.mxu0 %v441
  %v490 = vpop.f32.mrf.mxu0
  %v491 = vadd.f32 %v386, %v490
  %v492 = vpop.f32.mrf.mxu0
  %v493 = vadd.f32 %v391, %v492
  %494 = vmatmul.bf16.gmra.mxu0 %v442
  %v495 = vpop.f32.mrf.mxu0
  %v496 = vadd.f32 %v396, %v495
  %v497 = vpop.f32.mrf.mxu0
  %v498 = vadd.f32 %v401, %v497
  %499 = vdwg.mxu0
  %v500 = vmax.f32 %v461, 0.0
  %v501 = vmax.f32 %v463, 0.0
  %v502 = vmax.f32 %v466, 0.0
  %v503 = vmax.f32 %v468, 0.0
  %v504 = vmax.f32 %v471, 0.0
  %v505 = vmax.f32 %v473, 0.0
  %v506 = vmax.f32 %v476, 0.0
  %v507 = vmax.f32 %v478, 0.0
  %v508 = vmax.f32 %v481, 0.0
  %v509 = vmax.f32 %v483, 0.0
  %v510 = vmax.f32 %v486, 0.0
  %v511 = vmax.f32 %v488, 0.0
  %v512 = vmax.f32 %v491, 0.0
  %v513 = vmax.f32 %v493, 0.0
  %v514 = vmax.f32 %v496, 0.0
  %v515 = vmax.f32 %v498, 0.0
  %v516 = vpack.c.bf16 %v501, %v500
  %v517 = vpack.c.bf16 %v503, %v502
  %v518 = vpack.c.bf16 %v505, %v504
  %v519 = vpack.c.bf16 %v507, %v506
  %v520 = vpack.c.bf16 %v509, %v508
  %v521 = vpack.c.bf16 %v511, %v510
  %v522 = vpack.c.bf16 %v513, %v512
  %v523 = vpack.c.bf16 %v515, %v514
  %v524 = vld [vmem:[%s3] sm:$0xf]
  %v525 = vld [vmem:[%s3 + $0x4] sm:$0xf]
  %v526 = vld [vmem:[%s3 + $0x8] sm:$0xf]
  %v527 = vld [vmem:[%s3 + $0xc] sm:$0xf]
  %v528 = vld [vmem:[%s3 + $0x10] sm:$0xf]
  %v529 = vld [vmem:[%s3 + $0x14] sm:$0xf]
  %v530 = vld [vmem:[%s3 + $0x18] sm:$0xf]
  %v531 = vld [vmem:[%s3 + $0x1c] sm:$0xf]
  %v532 = vld [vmem:[%s3 + $0x20] sm:$0xf]
  %v533 = vld [vmem:[%s3 + $0x24] sm:$0xf]
  %v534 = vld [vmem:[%s3 + $0x28] sm:$0xf]
  %v535 = vld [vmem:[%s3 + $0x2c] sm:$0xf]
  %v536 = vld [vmem:[%s3 + $0x30] sm:$0xf]
  %v537 = vld [vmem:[%s3 + $0x34] sm:$0xf]
  %v538 = vld [vmem:[%s3 + $0x38] sm:$0xf]
  %v539 = vld [vmem:[%s3 + $0x3c] sm:$0xf]
  %v540 = vld [vmem:[%s7] sm:$0xff]
  %v541 = vld [vmem:[%s7 + $0x8] sm:$0xff]
  %v542 = vld [vmem:[%s7 + $0x10] sm:$0xff]
  %v543 = vld [vmem:[%s7 + $0x18] sm:$0xff]
  %v544 = vld [vmem:[%s7 + $0x20] sm:$0xff]
  %v545 = vld [vmem:[%s7 + $0x28] sm:$0xff]
  %v546 = vld [vmem:[%s7 + $0x30] sm:$0xff]
  %v547 = vld [vmem:[%s7 + $0x38] sm:$0xff]
  %v548 = vld [vmem:[%s7 + $0x40] sm:$0xff]
  %v549 = vld [vmem:[%s7 + $0x48] sm:$0xff]
  %v550 = vld [vmem:[%s7 + $0x50] sm:$0xff]
  %v551 = vld [vmem:[%s7 + $0x58] sm:$0xff]
  %v552 = vld [vmem:[%s7 + $0x60] sm:$0xff]
  %v553 = vld [vmem:[%s7 + $0x68] sm:$0xff]
  %v554 = vld [vmem:[%s7 + $0x70] sm:$0xff]
  %v555 = vld [vmem:[%s7 + $0x78] sm:$0xff]
  %557 = vset.pattern.permute.xlu0 0
  %558 = vperm.xlu0 %557, %v540
  %v559 = vpop.permute.xlu0 %558
  %562 = vset.pattern.permute.xlu0 0
  %563 = vperm.xlu0 %562, %v541
  %v564 = vpop.permute.xlu0 %563
  %567 = vset.pattern.permute.xlu0 0
  %568 = vperm.xlu0 %567, %v542
  %v569 = vpop.permute.xlu0 %568
  %572 = vset.pattern.permute.xlu0 0
  %573 = vperm.xlu0 %572, %v543
  %v574 = vpop.permute.xlu0 %573
  %577 = vset.pattern.permute.xlu0 0
  %578 = vperm.xlu0 %577, %v544
  %v579 = vpop.permute.xlu0 %578
  %582 = vset.pattern.permute.xlu0 0
  %583 = vperm.xlu0 %582, %v545
  %v584 = vpop.permute.xlu0 %583
  %587 = vset.pattern.permute.xlu0 0
  %588 = vperm.xlu0 %587, %v546
  %v589 = vpop.permute.xlu0 %588
  %592 = vset.pattern.permute.xlu0 0
  %593 = vperm.xlu0 %592, %v547
  %v594 = vpop.permute.xlu0 %593
  %597 = vset.pattern.permute.xlu0 0
  %598 = vperm.xlu0 %597, %v548
  %v599 = vpop.permute.xlu0 %598
  %602 = vset.pattern.permute.xlu0 0
  %603 = vperm.xlu0 %602, %v549
  %v604 = vpop.permute.xlu0 %603
  %607 = vset.pattern.permute.xlu0 0
  %608 = vperm.xlu0 %607, %v550
  %v609 = vpop.permute.xlu0 %608
  %612 = vset.pattern.permute.xlu0 0
  %613 = vperm.xlu0 %612, %v551
  %v614 = vpop.permute.xlu0 %613
  %617 = vset.pattern.permute.xlu0 0
  %618 = vperm.xlu0 %617, %v552
  %v619 = vpop.permute.xlu0 %618
  %622 = vset.pattern.permute.xlu0 0
  %623 = vperm.xlu0 %622, %v553
  %v624 = vpop.permute.xlu0 %623
  %627 = vset.pattern.permute.xlu0 0
  %628 = vperm.xlu0 %627, %v554
  %v629 = vpop.permute.xlu0 %628
  %632 = vset.pattern.permute.xlu0 0
  %633 = vperm.xlu0 %632, %v555
  %v634 = vpop.permute.xlu0 %633
  %v652 = vunpack.c.l.b16 %v524
  %v653 = vunpack.c.l.b16 %v525
  %v654 = vunpack.c.l.b16 %v526
  %v655 = vunpack.c.l.b16 %v527
  %v656 = vunpack.c.l.b16 %v528
  %v657 = vunpack.c.l.b16 %v529
  %v658 = vunpack.c.l.b16 %v530
  %v659 = vunpack.c.l.b16 %v531
  %v660 = vunpack.c.l.b16 %v532
  %v661 = vunpack.c.l.b16 %v533
  %v662 = vunpack.c.l.b16 %v534
  %v663 = vunpack.c.l.b16 %v535
  %v664 = vunpack.c.l.b16 %v536
  %v665 = vunpack.c.l.b16 %v537
  %v666 = vunpack.c.l.b16 %v538
  %v667 = vunpack.c.l.b16 %v539
  %v668 = vpack.c.b16 %v653, %v652
  %v669 = vpack.c.b16 %v655, %v654
  %v670 = vpack.c.b16 %v657, %v656
  %v671 = vpack.c.b16 %v659, %v658
  %v672 = vpack.c.b16 %v661, %v660
  %v673 = vpack.c.b16 %v663, %v662
  %v674 = vpack.c.b16 %v665, %v664
  %v675 = vpack.c.b16 %v667, %v666
  %684 = vmatpush.bf16.msra.mxu0 %v523
  %685 = vmatpush.bf16.msra.mxu0 %v522
  %686 = vmatpush.bf16.msra.mxu0 %v521
  %687 = vmatpush.bf16.msra.mxu0 %v520
  %688 = vmatpush.bf16.msra.mxu0 %v519
  %689 = vmatpush.bf16.msra.mxu0 %v518
  %690 = vmatpush.bf16.msra.mxu0 %v517
  %691 = vmatpush.bf16.msra.mxu0 %v516
  %692 = vmatmul.bf16.gmra.mxu0 %v668
  %v693 = vpop.f32.mrf.mxu0
  %v694 = vadd.f32 %v559, %v693
  %v695 = vpop.f32.mrf.mxu0
  %v696 = vadd.f32 %v564, %v695
  %697 = vmatmul.bf16.gmra.mxu0 %v669
  %v698 = vpop.f32.mrf.mxu0
  %v699 = vadd.f32 %v569, %v698
  %v700 = vpop.f32.mrf.mxu0
  %v701 = vadd.f32 %v574, %v700
  %702 = vmatmul.bf16.gmra.mxu0 %v670
  %v703 = vpop.f32.mrf.mxu0
  %v704 = vadd.f32 %v579, %v703
  %v705 = vpop.f32.mrf.mxu0
  %v706 = vadd.f32 %v584, %v705
  %707 = vmatmul.bf16.gmra.mxu0 %v671
  %v708 = vpop.f32.mrf.mxu0
  %v709 = vadd.f32 %v589, %v708
  %v710 = vpop.f32.mrf.mxu0
  %v711 = vadd.f32 %v594, %v710
  %712 = vmatmul.bf16.gmra.mxu0 %v672
  %v713 = vpop.f32.mrf.mxu0
  %v714 = vadd.f32 %v599, %v713
  %v715 = vpop.f32.mrf.mxu0
  %v716 = vadd.f32 %v604, %v715
  %717 = vmatmul.bf16.gmra.mxu0 %v673
  %v718 = vpop.f32.mrf.mxu0
  %v719 = vadd.f32 %v609, %v718
  %v720 = vpop.f32.mrf.mxu0
  %v721 = vadd.f32 %v614, %v720
  %722 = vmatmul.bf16.gmra.mxu0 %v674
  %v723 = vpop.f32.mrf.mxu0
  %v724 = vadd.f32 %v619, %v723
  %v725 = vpop.f32.mrf.mxu0
  %v726 = vadd.f32 %v624, %v725
  %727 = vmatmul.bf16.gmra.mxu0 %v675
  %v728 = vpop.f32.mrf.mxu0
  %v729 = vadd.f32 %v629, %v728
  %v730 = vpop.f32.mrf.mxu0
  %v731 = vadd.f32 %v634, %v730
  %732 = vdwg.mxu0
  %v733 = vmax.f32 %v694, 0.0
  %v734 = vmax.f32 %v696, 0.0
  %v735 = vmax.f32 %v699, 0.0
  %v736 = vmax.f32 %v701, 0.0
  %v737 = vmax.f32 %v704, 0.0
  %v738 = vmax.f32 %v706, 0.0
  %v739 = vmax.f32 %v709, 0.0
  %v740 = vmax.f32 %v711, 0.0
  %v741 = vmax.f32 %v714, 0.0
  %v742 = vmax.f32 %v716, 0.0
  %v743 = vmax.f32 %v719, 0.0
  %v744 = vmax.f32 %v721, 0.0
  %v745 = vmax.f32 %v724, 0.0
  %v746 = vmax.f32 %v726, 0.0
  %v747 = vmax.f32 %v729, 0.0
  %v748 = vmax.f32 %v731, 0.0
  %v749 = vpack.c.bf16 %v734, %v733
  %v750 = vpack.c.bf16 %v736, %v735
  %v751 = vpack.c.bf16 %v738, %v737
  %v752 = vpack.c.bf16 %v740, %v739
  %v753 = vpack.c.bf16 %v742, %v741
  %v754 = vpack.c.bf16 %v744, %v743
  %v755 = vpack.c.bf16 %v746, %v745
  %v756 = vpack.c.bf16 %v748, %v747
  %v757 = vld [vmem:[%s4] sm:$0xf]
  %v758 = vld [vmem:[%s4 + $0x4] sm:$0xf]
  %v759 = vld [vmem:[%s4 + $0x8] sm:$0xf]
  %v760 = vld [vmem:[%s4 + $0xc] sm:$0xf]
  %v761 = vld [vmem:[%s4 + $0x10] sm:$0xf]
  %v762 = vld [vmem:[%s4 + $0x14] sm:$0xf]
  %v763 = vld [vmem:[%s4 + $0x18] sm:$0xf]
  %v764 = vld [vmem:[%s4 + $0x1c] sm:$0xf]
  %v765 = vld [vmem:[%s4 + $0x20] sm:$0xf]
  %v766 = vld [vmem:[%s4 + $0x24] sm:$0xf]
  %v767 = vld [vmem:[%s4 + $0x28] sm:$0xf]
  %v768 = vld [vmem:[%s4 + $0x2c] sm:$0xf]
  %v769 = vld [vmem:[%s4 + $0x30] sm:$0xf]
  %v770 = vld [vmem:[%s4 + $0x34] sm:$0xf]
  %v771 = vld [vmem:[%s4 + $0x38] sm:$0xf]
  %v772 = vld [vmem:[%s4 + $0x3c] sm:$0xf]
  %v773 = vld [vmem:[%s8] sm:$0xff]
  %v774 = vld [vmem:[%s8 + $0x8] sm:$0xff]
  %v775 = vld [vmem:[%s8 + $0x10] sm:$0xff]
  %v776 = vld [vmem:[%s8 + $0x18] sm:$0xff]
  %v777 = vld [vmem:[%s8 + $0x20] sm:$0xff]
  %v778 = vld [vmem:[%s8 + $0x28] sm:$0xff]
  %v779 = vld [vmem:[%s8 + $0x30] sm:$0xff]
  %v780 = vld [vmem:[%s8 + $0x38] sm:$0xff]
  %v781 = vld [vmem:[%s8 + $0x40] sm:$0xff]
  %v782 = vld [vmem:[%s8 + $0x48] sm:$0xff]
  %v783 = vld [vmem:[%s8 + $0x50] sm:$0xff]
  %v784 = vld [vmem:[%s8 + $0x58] sm:$0xff]
  %v785 = vld [vmem:[%s8 + $0x60] sm:$0xff]
  %v786 = vld [vmem:[%s8 + $0x68] sm:$0xff]
  %v787 = vld [vmem:[%s8 + $0x70] sm:$0xff]
  %v788 = vld [vmem:[%s8 + $0x78] sm:$0xff]
  %790 = vset.pattern.permute.xlu0 0
  %791 = vperm.xlu0 %790, %v773
  %v792 = vpop.permute.xlu0 %791
  %795 = vset.pattern.permute.xlu0 0
  %796 = vperm.xlu0 %795, %v774
  %v797 = vpop.permute.xlu0 %796
  %799 = vset.pattern.permute.xlu0 0
  %800 = vperm.xlu0 %799, %v775
  %v801 = vpop.permute.xlu0 %800
  %803 = vset.pattern.permute.xlu0 0
  %804 = vperm.xlu0 %803, %v776
  %v805 = vpop.permute.xlu0 %804
  %807 = vset.pattern.permute.xlu0 0
  %808 = vperm.xlu0 %807, %v777
  %v809 = vpop.permute.xlu0 %808
  %811 = vset.pattern.permute.xlu0 0
  %812 = vperm.xlu0 %811, %v778
  %v813 = vpop.permute.xlu0 %812
  %815 = vset.pattern.permute.xlu0 0
  %816 = vperm.xlu0 %815, %v779
  %v817 = vpop.permute.xlu0 %816
  %819 = vset.pattern.permute.xlu0 0
  %820 = vperm.xlu0 %819, %v780
  %v821 = vpop.permute.xlu0 %820
  %823 = vset.pattern.permute.xlu0 0
  %824 = vperm.xlu0 %823, %v781
  %v825 = vpop.permute.xlu0 %824
  %827 = vset.pattern.permute.xlu0 0
  %828 = vperm.xlu0 %827, %v782
  %v829 = vpop.permute.xlu0 %828
  %831 = vset.pattern.permute.xlu0 0
  %832 = vperm.xlu0 %831, %v783
  %v833 = vpop.permute.xlu0 %832
  %835 = vset.pattern.permute.xlu0 0
  %836 = vperm.xlu0 %835, %v784
  %v837 = vpop.permute.xlu0 %836
  %839 = vset.pattern.permute.xlu0 0
  %840 = vperm.xlu0 %839, %v785
  %v841 = vpop.permute.xlu0 %840
  %843 = vset.pattern.permute.xlu0 0
  %844 = vperm.xlu0 %843, %v786
  %v845 = vpop.permute.xlu0 %844
  %847 = vset.pattern.permute.xlu0 0
  %848 = vperm.xlu0 %847, %v787
  %v849 = vpop.permute.xlu0 %848
  %851 = vset.pattern.permute.xlu0 0
  %852 = vperm.xlu0 %851, %v788
  %v853 = vpop.permute.xlu0 %852
  %v870 = vunpack.c.l.b16 %v757
  %v871 = vunpack.c.l.b16 %v758
  %v872 = vunpack.c.l.b16 %v759
  %v873 = vunpack.c.l.b16 %v760
  %v874 = vunpack.c.l.b16 %v761
  %v875 = vunpack.c.l.b16 %v762
  %v876 = vunpack.c.l.b16 %v763
  %v877 = vunpack.c.l.b16 %v764
  %v878 = vunpack.c.l.b16 %v765
  %v879 = vunpack.c.l.b16 %v766
  %v880 = vunpack.c.l.b16 %v767
  %v881 = vunpack.c.l.b16 %v768
  %v882 = vunpack.c.l.b16 %v769
  %v883 = vunpack.c.l.b16 %v770
  %v884 = vunpack.c.l.b16 %v771
  %v885 = vunpack.c.l.b16 %v772
  %v886 = vpack.c.b16 %v871, %v870
  %v887 = vpack.c.b16 %v873, %v872
  %v888 = vpack.c.b16 %v875, %v874
  %v889 = vpack.c.b16 %v877, %v876
  %v890 = vpack.c.b16 %v879, %v878
  %v891 = vpack.c.b16 %v881, %v880
  %v892 = vpack.c.b16 %v883, %v882
  %v893 = vpack.c.b16 %v885, %v884
  %902 = vmatpush.bf16.msra.mxu0 %v756
  %903 = vmatpush.bf16.msra.mxu0 %v755
  %904 = vmatpush.bf16.msra.mxu0 %v754
  %905 = vmatpush.bf16.msra.mxu0 %v753
  %906 = vmatpush.bf16.msra.mxu0 %v752
  %907 = vmatpush.bf16.msra.mxu0 %v751
  %908 = vmatpush.bf16.msra.mxu0 %v750
  %909 = vmatpush.bf16.msra.mxu0 %v749
  %910 = vmatmul.bf16.gmra.mxu0 %v886
  %v911 = vpop.f32.mrf.mxu0
  %v912 = vadd.f32 %v792, %v911
  %v913 = vpop.f32.mrf.mxu0
  %914 = vmatmul.bf16.gmra.mxu0 %v887
  %v915 = vpop.f32.mrf.mxu0
  %v916 = vpop.f32.mrf.mxu0
  %917 = vmatmul.bf16.gmra.mxu0 %v888
  %v918 = vpop.f32.mrf.mxu0
  %v919 = vpop.f32.mrf.mxu0
  %920 = vmatmul.bf16.gmra.mxu0 %v889
  %v921 = vpop.f32.mrf.mxu0
  %v922 = vpop.f32.mrf.mxu0
  %923 = vmatmul.bf16.gmra.mxu0 %v890
  %v924 = vpop.f32.mrf.mxu0
  %v925 = vpop.f32.mrf.mxu0
  %926 = vmatmul.bf16.gmra.mxu0 %v891
  %v927 = vpop.f32.mrf.mxu0
  %v928 = vpop.f32.mrf.mxu0
  %929 = vmatmul.bf16.gmra.mxu0 %v892
  %v930 = vpop.f32.mrf.mxu0
  %v931 = vpop.f32.mrf.mxu0
  %932 = vmatmul.bf16.gmra.mxu0 %v893
  %v933 = vpop.f32.mrf.mxu0
  %v934 = vpop.f32.mrf.mxu0
  %935 = vdwg.mxu0
  %936 = vst [vmem:[%s9] sm:$0xff] %v912
  // Predicated region
  $region38: #{feedforward_nn.1} parent=0 // pred_check
    _
  $region39: #{feedforward_nn.1} parent=0 // pred_check_branch
    %938 = sbr.rel (0) target = $region41
  $region40: #{feedforward_nn.1} parent=0 // pred_region
    _
  $region41: #{feedforward_nn.1} parent=0 // pred_fallthru
    _
  // Predicated region
  $region42: #{feedforward_nn.1} parent=0 // pred_check
    _
  $region43: #{feedforward_nn.1} parent=0 // pred_check_branch
    %940 = sbr.rel (0) target = $region45
  $region44: #{feedforward_nn.1} parent=0 // pred_region
    _
  $region45: #{feedforward_nn.1} parent=0 // pred_fallthru
    _

</llo_original>
